<compile_context>
chip_gen: v6e
topology: v6e:2x2x1
jax: 0.10.0
libtpu: 0.0.40
codegen_flags: <defaults>
</compile_context>

<pallas_src>
import jax
import jax.numpy as jnp
from jax.experimental import pallas as pl
from jax.experimental.pallas import tpu as pltpu


# ---------------------------------------------------------------- kernel ----

def _add_kernel(x_ref, b_ref, o_ref):
    # x_ref: (tm, tl).  b_ref: (tm, 1) (per-row bias) or (1, tl) (lane bias).
    # Pure VPU broadcast add, accumulated in the (promoted) output dtype.
    o_ref[...] = x_ref[...].astype(o_ref.dtype) + b_ref[...]


# ------------------------------------------------------------- tile logic ---

_TARGET_BLOCK_BYTES = 4 * 1024 * 1024   # ~4 MiB per x block (out block same size)
_SPLIT_MIN_BYTES = 4 * 1024 * 1024      # split rows of single-block slabs above this (v7x 2-TC)
_MIN_PALLAS_BYTES = 256 * 1024          # below this, plain XLA add wins (launch overhead)
_ROW_ALIGN = 32                         # sublane-safe for f32 / bf16 / int8
_LANE_FOLD_CAP = 8192                   # max folded lane width (2-D path)


def _pick_tiles(R, L, itemsize, row_bias):
    """Pick (tm, tl): ~_TARGET_BLOCK_BYTES per x block, lane dim full or a
    multiple of 128, row dim full or _ROW_ALIGN-aligned.  The per-row bias
    block's VMEM padding ((tm,1) -> (tm,128)) is charged to the budget."""
    max_tl = max(128, ((_TARGET_BLOCK_BYTES // (_ROW_ALIGN * itemsize)) // 128) * 128)
    tl = L if L <= max_tl else max_tl

    # bytes one block-row occupies in VMEM (row-bias block pads lanes to 128)
    row_bytes = (tl + (128 if row_bias else 0)) * itemsize
    tm = _TARGET_BLOCK_BYTES // max(1, row_bytes)
    tm = max(_ROW_ALIGN, (tm // _ROW_ALIGN) * _ROW_ALIGN)

    if tm >= R:
        tm = R
        # v7x has 2 TensorCores sharing HBM: a (1,1) grid on a mid/large slab
        # leaves half the chip idle.  Split rows into ~4 blocks when possible.
        n_lane_blocks = pl.cdiv(L, tl)
        if (n_lane_blocks == 1
                and R * L * itemsize > _SPLIT_MIN_BYTES
                and R >= 2 * _ROW_ALIGN):
            tm = max(_ROW_ALIGN, ((R // 4) // _ROW_ALIGN) * _ROW_ALIGN)
    return tm, tl


def _add_bias_slab(x2d, b2d, *, row_bias, out_dtype):
    """x2d: (R, L).  b2d: (R, 1) if row_bias else (1, L).  Returns x2d + b2d
    in out_dtype via a tiled Pallas kernel."""
    R, L = x2d.shape
    itemsize = jax.ShapeDtypeStruct((), out_dtype).dtype.itemsize
    tm, tl = _pick_tiles(R, L, itemsize, row_bias)
    grid = (pl.cdiv(R, tm), pl.cdiv(L, tl))

    if row_bias:
        b_spec = pl.BlockSpec((tm, 1), lambda i, j: (i, 0))
    else:
        b_spec = pl.BlockSpec((1, tl), lambda i, j: (0, j))

    return pl.pallas_call(
        _add_kernel,
        out_shape=jax.ShapeDtypeStruct((R, L), out_dtype),
        grid_spec=pltpu.PrefetchScalarGridSpec(
            num_scalar_prefetch=0,
            grid=grid,
            in_specs=[
                pl.BlockSpec((tm, tl), lambda i, j: (i, j)),
                b_spec,
            ],
            out_specs=pl.BlockSpec((tm, tl), lambda i, j: (i, j)),
        ),
        compiler_params=pltpu.CompilerParams(
            dimension_semantics=("parallel", "parallel"),
            vmem_limit_bytes=48 * 1024 * 1024,
        ),
    )(x2d, b2d)


# ---------------------------------------------------------------- wrapper ---

def add_bias(x, bias):
    """Equivalent of AddBias.forward.  `bias` is the per-channel vector
    (shape (C,) or (C, 1) like the stored nn.Parameter)."""
    bias = jnp.asarray(bias).reshape(-1)
    out_dtype = jnp.promote_types(x.dtype, bias.dtype)
    b = bias.astype(out_dtype)
    C = b.shape[0]
    nbytes = x.size * x.dtype.itemsize

    if x.ndim == 2:
        N, Cx = x.shape
        assert Cx == C, f"channel mismatch: {Cx} vs {C}"
        if nbytes < _MIN_PALLAS_BYTES:
            return x.astype(out_dtype) + b.reshape(1, C)

        # Fold rows into the lane axis (free contiguous reshape): pick the
        # LARGEST divisor f of N with f*C <= _LANE_FOLD_CAP so tiny C does not
        # force 4/128-wide masked stores, even for odd / non-pow2 batch sizes.
        f_hi = min(N, max(1, _LANE_FOLD_CAP // C))
        f = 1
        for cand in range(f_hi, 0, -1):
            if N % cand == 0:
                f = cand
                break
        x_slab = x.reshape(N // f, f * C)
        b_row = jnp.tile(b, f).reshape(1, f * C)
        out = _add_bias_slab(x_slab, b_row, row_bias=False, out_dtype=out_dtype)
        return out.reshape(N, C)

    elif x.ndim == 4:
        N, Cx, H, W = x.shape
        assert Cx == C, f"channel mismatch: {Cx} vs {C}"
        if nbytes < _MIN_PALLAS_BYTES:
            return x.astype(out_dtype) + b.reshape(1, C, 1, 1)

        HW = H * W
        lane_bias_bytes = C * HW * out_dtype.itemsize
        if HW % 128 == 0:
            # H*W already lane-dense: (N*C, H*W) slab + (N*C, 1) per-row bias.
            x_slab = x.reshape(N * C, HW)
            b_col = jnp.tile(b, N).reshape(N * C, 1)
            out = _add_bias_slab(x_slab, b_col, row_bias=True, out_dtype=out_dtype)
        elif lane_bias_bytes <= 8 * 1024 * 1024:
            # Ragged H*W (7x7, 14x14, ...): fold C into the lane axis so every
            # store is full-width and every DMA row is contiguous & >=128 wide.
            x_slab = x.reshape(N, C * HW)
            b_row = jnp.repeat(b, HW).reshape(1, C * HW)
            out = _add_bias_slab(x_slab, b_row, row_bias=False, out_dtype=out_dtype)
        else:
            # Enormous C*H*W with ragged H*W: accept masked tail stores.
            x_slab = x.reshape(N * C, HW)
            b_col = jnp.tile(b, N).reshape(N * C, 1)
            out = _add_bias_slab(x_slab, b_col, row_bias=True, out_dtype=out_dtype)
        return out.reshape(N, C, H, W)

    else:
        raise ValueError(f"AddBias expects 2-D or 4-D input, got ndim={x.ndim}")


# ------------------------------------------------------------------- main ---

if __name__ == "__main__":
    key = jax.random.PRNGKey(0)
    keys = jax.random.split(key, 8)

    # --- tiny shapes from the module spec (XLA-bypass path) -----------------
    C = 4
    bias = jax.random.normal(keys[0], (C,), dtype=jnp.float32)
    x4d_small = jax.random.normal(keys[1], (2, C, 16, 16), dtype=jnp.float32)
    x2d_small = jax.random.normal(keys[2], (2, C), dtype=jnp.float32)

    out = jax.block_until_ready(add_bias(x4d_small, bias))
    assert out.shape == x4d_small.shape and out.dtype == x4d_small.dtype
    assert jnp.allclose(out, x4d_small + bias.reshape(1, C, 1, 1), atol=1e-6, rtol=1e-6)

    out = jax.block_until_ready(add_bias(x2d_small, bias))
    assert out.shape == x2d_small.shape and out.dtype == x2d_small.dtype
    assert jnp.allclose(out, x2d_small + bias.reshape(1, C), atol=1e-6, rtol=1e-6)

    # --- 4-D, H*W multiple of 128 -> Pallas row-bias path --------------------
    C2 = 32
    bias2 = jax.random.normal(keys[3], (C2,), dtype=jnp.float32)
    x4d_a = jax.random.normal(keys[4], (4, C2, 32, 32), dtype=jnp.float32)   # 512 KiB
    out = jax.block_until_ready(add_bias(x4d_a, bias2))
    assert jnp.allclose(out, x4d_a + bias2.reshape(1, C2, 1, 1), atol=1e-6, rtol=1e-6)

    # --- 4-D, H*W NOT a multiple of 128 -> Pallas lane-fold path -------------
    C3 = 64
    bias3 = jax.random.normal(keys[5], (C3,), dtype=jnp.float32)
    x4d_b = jax.random.normal(keys[6], (8, C3, 14, 14), dtype=jnp.float32)   # ~392 KiB
    out = jax.block_until_ready(add_bias(x4d_b, bias3))
    assert jnp.allclose(out, x4d_b + bias3.reshape(1, C3, 1, 1), atol=1e-6, rtol=1e-6)

    # --- 2-D, non-power-of-two N with small C -> divisor-fold Pallas path ----
    C4 = 48
    bias4 = jax.random.normal(keys[7], (C4,), dtype=jnp.float32)
    x2d_b = jax.random.normal(keys[0], (3000, C4), dtype=jnp.float32)        # ~576 KiB
    out = jax.block_until_ready(add_bias(x2d_b, bias4))
    assert jnp.allclose(out, x2d_b + bias4.reshape(1, C4), atol=1e-6, rtol=1e-6)

    print("KERNEL_OK")
</pallas_src>

<mosaic_0001>
module attributes {stable_mosaic.version = 11 : i64} {
  func.func @_add_kernel(%arg0: i32, %arg1: i32, %arg2: memref<128x1024xf32, #tpu.memory_space<vmem>>, %arg3: memref<128x1xf32, #tpu.memory_space<vmem>>, %arg4: memref<128x1024xf32, #tpu.memory_space<vmem>>) attributes {dimension_semantics = [#tpu.dimension_semantics<parallel>, #tpu.dimension_semantics<parallel>], iteration_bounds = array<i64: 1, 1>, scalar_prefetch = 0 : i64, scratch_operands = 0 : i64, tpu.core_type = #tpu.core_type<tc>, window_params = [{transform_indices = @transform_0, window_bounds = array<i64: 128, 1024>}, {transform_indices = @transform_1, window_bounds = array<i64: 128, 1>}, {transform_indices = @transform_2, window_bounds = array<i64: 128, 1024>}]} {
    %c0 = arith.constant 0 : index
    %c0_0 = arith.constant 0 : index
    %0 = vector.load %arg2[%c0, %c0_0] : memref<128x1024xf32, #tpu.memory_space<vmem>>, vector<128x1024xf32>
    %c0_1 = arith.constant 0 : index
    %c0_2 = arith.constant 0 : index
    %1 = vector.load %arg3[%c0_1, %c0_2] : memref<128x1xf32, #tpu.memory_space<vmem>>, vector<128x1xf32>
    %2 = vector.broadcast %1 : vector<128x1xf32> to vector<128x1024xf32>
    %3 = arith.addf %0, %2 : vector<128x1024xf32>
    %c0_3 = arith.constant 0 : index
    %c0_4 = arith.constant 0 : index
    %4 = vector.load %arg4[%c0_3, %c0_4] : memref<128x1024xf32, #tpu.memory_space<vmem>>, vector<128x1024xf32>
    tpu.vector_store %arg4[%c0_3, %c0_4], %3 {strides = array<i32>} : memref<128x1024xf32, #tpu.memory_space<vmem>>, vector<128x1024xf32>,
    return
  }
  func.func @transform_0(%arg0: i32, %arg1: i32) -> (i32, i32) {
    %c0_i32 = arith.constant 0 : i32
    return %arg0, %arg1 : i32, i32
  }
  func.func @transform_1(%arg0: i32, %arg1: i32) -> (i32, i32) {
    %c0_i32 = arith.constant 0 : i32
    %c0_i32_0 = arith.constant 0 : i32
    return %arg0, %c0_i32 : i32, i32
  }
  func.func @transform_2(%arg0: i32, %arg1: i32) -> (i32, i32) {
    %c0_i32 = arith.constant 0 : i32
    return %arg0, %arg1 : i32, i32
  }
}

</mosaic_0001>

<llo_original>
// kernel: tpu_custom_call.1
$region0: #{tpu_custom_call.1}
  #allocation0 [shape = 'u32[]', space=smem, size = 0x4, offset = 0x4, fixed_abs, tag = 'smem constant byte address 0x4 - core index']
  #allocation1 [shape = 'u32[144,128]{1,0:T(1,128)}', space=vmem, size = 0x12000, scoped, tag = 'internal scratch']
  %s0 = inlined_call_operand.hbm [shape: f32[128,1024], index: 0, kind: input, shape index: {}]
  %s1 = inlined_call_operand.vmem [shape: f32[128,1], index: 1, kind: input, shape index: {}]
  %s2 = inlined_call_operand.hbm [shape: f32[128,1024], index: 2, kind: output, shape index: {}]
  %s3 = sld [smem:[#allocation0]]
  $region22: #{tpu_custom_call.1} parent=0
    _
  %s5 = ssub.s32 1, %s3
  %s6 = scalar_select 0, %s5, %s3
  $region1: #{tpu_custom_call.1} parent=0
    #allocation2 [shape = 'u8[524288]{0}', space=vmem, size = 0x80000, scoped, tag = 'input window, operand 0, single buffered']
    #allocation3 [shape = 's32[1]{0}', space=sflag, size = 0x4, scoped, tag = 'scoped memory for tpu_custom_call.1']
    #allocation4 [shape = 's32[1]{0}', space=sflag, size = 0x4, scoped, tag = 'scoped memory for tpu_custom_call.1']
    #allocation5 [shape = 'u8[524288]{0}', space=vmem, size = 0x80000, scoped, tag = 'output window, operand 0, single buffered']
    %7 = vsyncpa [#allocation3], 0
    %8 = vsyncpa [#allocation4], 0
    // Predicated region
    $region2: #{tpu_custom_call.1} parent=1 // pred_check
      _
    $region3: #{tpu_custom_call.1} parent=1 // pred_check_branch
      %10 = sbr.rel (0) target = $region5
    $region4: #{tpu_custom_call.1} parent=1 // pred_region
      %s12 = ssub.s32 16384, 16384
      %13 = vsyncadd [#allocation3], %s12
      %s14 = sshll.u32 [#allocation2], 4
      %s15 = int_to_ptr.vmem [resolvable:$true] %s14
      %20 = dma.hbm_to_vmem [thread:$0]  %s0, 16384, %s15, [#allocation3], 1024, 1024, 64
    $region5: #{tpu_custom_call.1} parent=1 // pred_fallthru
      _
    // Predicated region
    $region6: #{tpu_custom_call.1} parent=1 // pred_check
      _
    $region7: #{tpu_custom_call.1} parent=1 // pred_check_branch
      %22 = sbr.rel (0) target = $region9
    $region8: #{tpu_custom_call.1} parent=1 // pred_region
      _
    $region9: #{tpu_custom_call.1} parent=1 // pred_fallthru
      _
    // Predicated region
    $region10: #{tpu_custom_call.1} parent=1 // pred_check
      _
    $region11: #{tpu_custom_call.1} parent=1 // pred_check_branch
      %24 = sbr.rel (0) target = $region13
    $region12: #{tpu_custom_call.1} parent=1 // pred_region
      %25 = dma.done [#allocation3], 16384
    $region13: #{tpu_custom_call.1} parent=1 // pred_fallthru
      _
    %v26 = vld [vmem:[#allocation2] sm:$0xff]
    %v27 = vld [vmem:[#allocation2 + $0x8] sm:$0xff]
    %v28 = vld [vmem:[#allocation2 + $0x10] sm:$0xff]
    %v29 = vld [vmem:[#allocation2 + $0x18] sm:$0xff]
    %v30 = vld [vmem:[#allocation2 + $0x20] sm:$0xff]
    %v31 = vld [vmem:[#allocation2 + $0x28] sm:$0xff]
    %v32 = vld [vmem:[#allocation2 + $0x30] sm:$0xff]
    %v33 = vld [vmem:[#allocation2 + $0x38] sm:$0xff]
    %v34 = vld [vmem:[#allocation2 + $0x40] sm:$0xff]
    %v35 = vld [vmem:[#allocation2 + $0x48] sm:$0xff]
    %v36 = vld [vmem:[#allocation2 + $0x50] sm:$0xff]
    %v37 = vld [vmem:[#allocation2 + $0x58] sm:$0xff]
    %v38 = vld [vmem:[#allocation2 + $0x60] sm:$0xff]
    %v39 = vld [vmem:[#allocation2 + $0x68] sm:$0xff]
    %v40 = vld [vmem:[#allocation2 + $0x70] sm:$0xff]
    %v41 = vld [vmem:[#allocation2 + $0x78] sm:$0xff]
    %v42 = vld [vmem:[#allocation2 + $0x80] sm:$0xff]
    %v43 = vld [vmem:[#allocation2 + $0x88] sm:$0xff]
    %v44 = vld [vmem:[#allocation2 + $0x90] sm:$0xff]
    %v45 = vld [vmem:[#allocation2 + $0x98] sm:$0xff]
    %v46 = vld [vmem:[#allocation2 + $0xa0] sm:$0xff]
    %v47 = vld [vmem:[#allocation2 + $0xa8] sm:$0xff]
    %v48 = vld [vmem:[#allocation2 + $0xb0] sm:$0xff]
    %v49 = vld [vmem:[#allocation2 + $0xb8] sm:$0xff]
    %v50 = vld [vmem:[#allocation2 + $0xc0] sm:$0xff]
    %v51 = vld [vmem:[#allocation2 + $0xc8] sm:$0xff]
    %v52 = vld [vmem:[#allocation2 + $0xd0] sm:$0xff]
    %v53 = vld [vmem:[#allocation2 + $0xd8] sm:$0xff]
    %v54 = vld [vmem:[#allocation2 + $0xe0] sm:$0xff]
    %v55 = vld [vmem:[#allocation2 + $0xe8] sm:$0xff]
    %v56 = vld [vmem:[#allocation2 + $0xf0] sm:$0xff]
    %v57 = vld [vmem:[#allocation2 + $0xf8] sm:$0xff]
    %v58 = vld [vmem:[#allocation2 + $0x100] sm:$0xff]
    %v59 = vld [vmem:[#allocation2 + $0x108] sm:$0xff]
    %v60 = vld [vmem:[#allocation2 + $0x110] sm:$0xff]
    %v61 = vld [vmem:[#allocation2 + $0x118] sm:$0xff]
    %v62 = vld [vmem:[#allocation2 + $0x120] sm:$0xff]
    %v63 = vld [vmem:[#allocation2 + $0x128] sm:$0xff]
    %v64 = vld [vmem:[#allocation2 + $0x130] sm:$0xff]
    %v65 = vld [vmem:[#allocation2 + $0x138] sm:$0xff]
    %v66 = vld [vmem:[#allocation2 + $0x140] sm:$0xff]
    %v67 = vld [vmem:[#allocation2 + $0x148] sm:$0xff]
    %v68 = vld [vmem:[#allocation2 + $0x150] sm:$0xff]
    %v69 = vld [vmem:[#allocation2 + $0x158] sm:$0xff]
    %v70 = vld [vmem:[#allocation2 + $0x160] sm:$0xff]
    %v71 = vld [vmem:[#allocation2 + $0x168] sm:$0xff]
    %v72 = vld [vmem:[#allocation2 + $0x170] sm:$0xff]
    %v73 = vld [vmem:[#allocation2 + $0x178] sm:$0xff]
    %v74 = vld [vmem:[#allocation2 + $0x180] sm:$0xff]
    %v75 = vld [vmem:[#allocation2 + $0x188] sm:$0xff]
    %v76 = vld [vmem:[#allocation2 + $0x190] sm:$0xff]
    %v77 = vld [vmem:[#allocation2 + $0x198] sm:$0xff]
    %v78 = vld [vmem:[#allocation2 + $0x1a0] sm:$0xff]
    %v79 = vld [vmem:[#allocation2 + $0x1a8] sm:$0xff]
    %v80 = vld [vmem:[#allocation2 + $0x1b0] sm:$0xff]
    %v81 = vld [vmem:[#allocation2 + $0x1b8] sm:$0xff]
    %v82 = vld [vmem:[#allocation2 + $0x1c0] sm:$0xff]
    %v83 = vld [vmem:[#allocation2 + $0x1c8] sm:$0xff]
    %v84 = vld [vmem:[#allocation2 + $0x1d0] sm:$0xff]
    %v85 = vld [vmem:[#allocation2 + $0x1d8] sm:$0xff]
    %v86 = vld [vmem:[#allocation2 + $0x1e0] sm:$0xff]
    %v87 = vld [vmem:[#allocation2 + $0x1e8] sm:$0xff]
    %v88 = vld [vmem:[#allocation2 + $0x1f0] sm:$0xff]
    %v89 = vld [vmem:[#allocation2 + $0x1f8] sm:$0xff]
    %v90 = vld [vmem:[#allocation2 + $0x200] sm:$0xff]
    %v91 = vld [vmem:[#allocation2 + $0x208] sm:$0xff]
    %v92 = vld [vmem:[#allocation2 + $0x210] sm:$0xff]
    %v93 = vld [vmem:[#allocation2 + $0x218] sm:$0xff]
    %v94 = vld [vmem:[#allocation2 + $0x220] sm:$0xff]
    %v95 = vld [vmem:[#allocation2 + $0x228] sm:$0xff]
    %v96 = vld [vmem:[#allocation2 + $0x230] sm:$0xff]
    %v97 = vld [vmem:[#allocation2 + $0x238] sm:$0xff]
    %v98 = vld [vmem:[#allocation2 + $0x240] sm:$0xff]
    %v99 = vld [vmem:[#allocation2 + $0x248] sm:$0xff]
    %v100 = vld [vmem:[#allocation2 + $0x250] sm:$0xff]
    %v101 = vld [vmem:[#allocation2 + $0x258] sm:$0xff]
    %v102 = vld [vmem:[#allocation2 + $0x260] sm:$0xff]
    %v103 = vld [vmem:[#allocation2 + $0x268] sm:$0xff]
    %v104 = vld [vmem:[#allocation2 + $0x270] sm:$0xff]
    %v105 = vld [vmem:[#allocation2 + $0x278] sm:$0xff]
    %v106 = vld [vmem:[#allocation2 + $0x280] sm:$0xff]
    %v107 = vld [vmem:[#allocation2 + $0x288] sm:$0xff]
    %v108 = vld [vmem:[#allocation2 + $0x290] sm:$0xff]
    %v109 = vld [vmem:[#allocation2 + $0x298] sm:$0xff]
    %v110 = vld [vmem:[#allocation2 + $0x2a0] sm:$0xff]
    %v111 = vld [vmem:[#allocation2 + $0x2a8] sm:$0xff]
    %v112 = vld [vmem:[#allocation2 + $0x2b0] sm:$0xff]
    %v113 = vld [vmem:[#allocation2 + $0x2b8] sm:$0xff]
    %v114 = vld [vmem:[#allocation2 + $0x2c0] sm:$0xff]
    %v115 = vld [vmem:[#allocation2 + $0x2c8] sm:$0xff]
    %v116 = vld [vmem:[#allocation2 + $0x2d0] sm:$0xff]
    %v117 = vld [vmem:[#allocation2 + $0x2d8] sm:$0xff]
    %v118 = vld [vmem:[#allocation2 + $0x2e0] sm:$0xff]
    %v119 = vld [vmem:[#allocation2 + $0x2e8] sm:$0xff]
    %v120 = vld [vmem:[#allocation2 + $0x2f0] sm:$0xff]
    %v121 = vld [vmem:[#allocation2 + $0x2f8] sm:$0xff]
    %v122 = vld [vmem:[#allocation2 + $0x300] sm:$0xff]
    %v123 = vld [vmem:[#allocation2 + $0x308] sm:$0xff]
    %v124 = vld [vmem:[#allocation2 + $0x310] sm:$0xff]
    %v125 = vld [vmem:[#allocation2 + $0x318] sm:$0xff]
    %v126 = vld [vmem:[#allocation2 + $0x320] sm:$0xff]
    %v127 = vld [vmem:[#allocation2 + $0x328] sm:$0xff]
    %v128 = vld [vmem:[#allocation2 + $0x330] sm:$0xff]
    %v129 = vld [vmem:[#allocation2 + $0x338] sm:$0xff]
    %v130 = vld [vmem:[#allocation2 + $0x340] sm:$0xff]
    %v131 = vld [vmem:[#allocation2 + $0x348] sm:$0xff]
    %v132 = vld [vmem:[#allocation2 + $0x350] sm:$0xff]
    %v133 = vld [vmem:[#allocation2 + $0x358] sm:$0xff]
    %v134 = vld [vmem:[#allocation2 + $0x360] sm:$0xff]
    %v135 = vld [vmem:[#allocation2 + $0x368] sm:$0xff]
    %v136 = vld [vmem:[#allocation2 + $0x370] sm:$0xff]
    %v137 = vld [vmem:[#allocation2 + $0x378] sm:$0xff]
    %v138 = vld [vmem:[#allocation2 + $0x380] sm:$0xff]
    %v139 = vld [vmem:[#allocation2 + $0x388] sm:$0xff]
    %v140 = vld [vmem:[#allocation2 + $0x390] sm:$0xff]
    %v141 = vld [vmem:[#allocation2 + $0x398] sm:$0xff]
    %v142 = vld [vmem:[#allocation2 + $0x3a0] sm:$0xff]
    %v143 = vld [vmem:[#allocation2 + $0x3a8] sm:$0xff]
    %v144 = vld [vmem:[#allocation2 + $0x3b0] sm:$0xff]
    %v145 = vld [vmem:[#allocation2 + $0x3b8] sm:$0xff]
    %v146 = vld [vmem:[#allocation2 + $0x3c0] sm:$0xff]
    %v147 = vld [vmem:[#allocation2 + $0x3c8] sm:$0xff]
    %v148 = vld [vmem:[#allocation2 + $0x3d0] sm:$0xff]
    %v149 = vld [vmem:[#allocation2 + $0x3d8] sm:$0xff]
    %v150 = vld [vmem:[#allocation2 + $0x3e0] sm:$0xff]
    %v151 = vld [vmem:[#allocation2 + $0x3e8] sm:$0xff]
    %v152 = vld [vmem:[#allocation2 + $0x3f0] sm:$0xff]
    %v153 = vld [vmem:[#allocation2 + $0x3f8] sm:$0xff]
    %v154 = vld [vmem:[%s1] sm:$0xff]
    %v155 = vld [vmem:[%s1 + $0x8] sm:$0xff]
    %v156 = vld [vmem:[%s1 + $0x10] sm:$0xff]
    %v157 = vld [vmem:[%s1 + $0x18] sm:$0xff]
    %v158 = vld [vmem:[%s1 + $0x20] sm:$0xff]
    %v159 = vld [vmem:[%s1 + $0x28] sm:$0xff]
    %v160 = vld [vmem:[%s1 + $0x30] sm:$0xff]
    %v161 = vld [vmem:[%s1 + $0x38] sm:$0xff]
    %v162 = vld [vmem:[%s1 + $0x40] sm:$0xff]
    %v163 = vld [vmem:[%s1 + $0x48] sm:$0xff]
    %v164 = vld [vmem:[%s1 + $0x50] sm:$0xff]
    %v165 = vld [vmem:[%s1 + $0x58] sm:$0xff]
    %v166 = vld [vmem:[%s1 + $0x60] sm:$0xff]
    %v167 = vld [vmem:[%s1 + $0x68] sm:$0xff]
    %v168 = vld [vmem:[%s1 + $0x70] sm:$0xff]
    %v169 = vld [vmem:[%s1 + $0x78] sm:$0xff]
    %171 = vset.pattern.permute.xlu0 0
    %172 = vperm.xlu0 %171, %v154
    %v173 = vpop.permute.xlu0 %172
    %176 = vset.pattern.permute.xlu0 0
    %177 = vperm.xlu0 %176, %v155
    %v178 = vpop.permute.xlu0 %177
    %181 = vset.pattern.permute.xlu0 0
    %182 = vperm.xlu0 %181, %v156
    %v183 = vpop.permute.xlu0 %182
    %186 = vset.pattern.permute.xlu0 0
    %187 = vperm.xlu0 %186, %v157
    %v188 = vpop.permute.xlu0 %187
    %191 = vset.pattern.permute.xlu0 0
    %192 = vperm.xlu0 %191, %v158
    %v193 = vpop.permute.xlu0 %192
    %196 = vset.pattern.permute.xlu0 0
    %197 = vperm.xlu0 %196, %v159
    %v198 = vpop.permute.xlu0 %197
    %201 = vset.pattern.permute.xlu0 0
    %202 = vperm.xlu0 %201, %v160
    %v203 = vpop.permute.xlu0 %202
    %206 = vset.pattern.permute.xlu0 0
    %207 = vperm.xlu0 %206, %v161
    %v208 = vpop.permute.xlu0 %207
    %211 = vset.pattern.permute.xlu0 0
    %212 = vperm.xlu0 %211, %v162
    %v213 = vpop.permute.xlu0 %212
    %216 = vset.pattern.permute.xlu0 0
    %217 = vperm.xlu0 %216, %v163
    %v218 = vpop.permute.xlu0 %217
    %221 = vset.pattern.permute.xlu0 0
    %222 = vperm.xlu0 %221, %v164
    %v223 = vpop.permute.xlu0 %222
    %226 = vset.pattern.permute.xlu0 0
    %227 = vperm.xlu0 %226, %v165
    %v228 = vpop.permute.xlu0 %227
    %231 = vset.pattern.permute.xlu0 0
    %232 = vperm.xlu0 %231, %v166
    %v233 = vpop.permute.xlu0 %232
    %236 = vset.pattern.permute.xlu0 0
    %237 = vperm.xlu0 %236, %v167
    %v238 = vpop.permute.xlu0 %237
    %241 = vset.pattern.permute.xlu0 0
    %242 = vperm.xlu0 %241, %v168
    %v243 = vpop.permute.xlu0 %242
    %246 = vset.pattern.permute.xlu0 0
    %247 = vperm.xlu0 %246, %v169
    %v248 = vpop.permute.xlu0 %247
    %v250 = vadd.f32 %v26, %v173
    %v251 = vadd.f32 %v27, %v173
    %v252 = vadd.f32 %v28, %v173
    %v253 = vadd.f32 %v29, %v173
    %v254 = vadd.f32 %v30, %v173
    %v255 = vadd.f32 %v31, %v173
    %v256 = vadd.f32 %v32, %v173
    %v257 = vadd.f32 %v33, %v173
    %v258 = vadd.f32 %v34, %v178
    %v259 = vadd.f32 %v35, %v178
    %v260 = vadd.f32 %v36, %v178
    %v261 = vadd.f32 %v37, %v178
    %v262 = vadd.f32 %v38, %v178
    %v263 = vadd.f32 %v39, %v178
    %v264 = vadd.f32 %v40, %v178
    %v265 = vadd.f32 %v41, %v178
    %v266 = vadd.f32 %v42, %v183
    %v267 = vadd.f32 %v43, %v183
    %v268 = vadd.f32 %v44, %v183
    %v269 = vadd.f32 %v45, %v183
    %v270 = vadd.f32 %v46, %v183
    %v271 = vadd.f32 %v47, %v183
    %v272 = vadd.f32 %v48, %v183
    %v273 = vadd.f32 %v49, %v183
    %v274 = vadd.f32 %v50, %v188
    %v275 = vadd.f32 %v51, %v188
    %v276 = vadd.f32 %v52, %v188
    %v277 = vadd.f32 %v53, %v188
    %v278 = vadd.f32 %v54, %v188
    %v279 = vadd.f32 %v55, %v188
    %v280 = vadd.f32 %v56, %v188
    %v281 = vadd.f32 %v57, %v188
    %v282 = vadd.f32 %v58, %v193
    %v283 = vadd.f32 %v59, %v193
    %v284 = vadd.f32 %v60, %v193
    %v285 = vadd.f32 %v61, %v193
    %v286 = vadd.f32 %v62, %v193
    %v287 = vadd.f32 %v63, %v193
    %v288 = vadd.f32 %v64, %v193
    %v289 = vadd.f32 %v65, %v193
    %v290 = vadd.f32 %v66, %v198
    %v291 = vadd.f32 %v67, %v198
    %v292 = vadd.f32 %v68, %v198
    %v293 = vadd.f32 %v69, %v198
    %v294 = vadd.f32 %v70, %v198
    %v295 = vadd.f32 %v71, %v198
    %v296 = vadd.f32 %v72, %v198
    %v297 = vadd.f32 %v73, %v198
    %v298 = vadd.f32 %v74, %v203
    %v299 = vadd.f32 %v75, %v203
    %v300 = vadd.f32 %v76, %v203
    %v301 = vadd.f32 %v77, %v203
    %v302 = vadd.f32 %v78, %v203
    %v303 = vadd.f32 %v79, %v203
    %v304 = vadd.f32 %v80, %v203
    %v305 = vadd.f32 %v81, %v203
    %v306 = vadd.f32 %v82, %v208
    %v307 = vadd.f32 %v83, %v208
    %v308 = vadd.f32 %v84, %v208
    %v309 = vadd.f32 %v85, %v208
    %v310 = vadd.f32 %v86, %v208
    %v311 = vadd.f32 %v87, %v208
    %v312 = vadd.f32 %v88, %v208
    %v313 = vadd.f32 %v89, %v208
    %v314 = vadd.f32 %v90, %v213
    %v315 = vadd.f32 %v91, %v213
    %v316 = vadd.f32 %v92, %v213
    %v317 = vadd.f32 %v93, %v213
    %v318 = vadd.f32 %v94, %v213
    %v319 = vadd.f32 %v95, %v213
    %v320 = vadd.f32 %v96, %v213
    %v321 = vadd.f32 %v97, %v213
    %v322 = vadd.f32 %v98, %v218
    %v323 = vadd.f32 %v99, %v218
    %v324 = vadd.f32 %v100, %v218
    %v325 = vadd.f32 %v101, %v218
    %v326 = vadd.f32 %v102, %v218
    %v327 = vadd.f32 %v103, %v218
    %v328 = vadd.f32 %v104, %v218
    %v329 = vadd.f32 %v105, %v218
    %v330 = vadd.f32 %v106, %v223
    %v331 = vadd.f32 %v107, %v223
    %v332 = vadd.f32 %v108, %v223
    %v333 = vadd.f32 %v109, %v223
    %v334 = vadd.f32 %v110, %v223
    %v335 = vadd.f32 %v111, %v223
    %v336 = vadd.f32 %v112, %v223
    %v337 = vadd.f32 %v113, %v223
    %v338 = vadd.f32 %v114, %v228
    %v339 = vadd.f32 %v115, %v228
    %v340 = vadd.f32 %v116, %v228
    %v341 = vadd.f32 %v117, %v228
    %v342 = vadd.f32 %v118, %v228
    %v343 = vadd.f32 %v119, %v228
    %v344 = vadd.f32 %v120, %v228
    %v345 = vadd.f32 %v121, %v228
    %v346 = vadd.f32 %v122, %v233
    %v347 = vadd.f32 %v123, %v233
    %v348 = vadd.f32 %v124, %v233
    %v349 = vadd.f32 %v125, %v233
    %v350 = vadd.f32 %v126, %v233
    %v351 = vadd.f32 %v127, %v233
    %v352 = vadd.f32 %v128, %v233
    %v353 = vadd.f32 %v129, %v233
    %v354 = vadd.f32 %v130, %v238
    %v355 = vadd.f32 %v131, %v238
    %v356 = vadd.f32 %v132, %v238
    %v357 = vadd.f32 %v133, %v238
    %v358 = vadd.f32 %v134, %v238
    %v359 = vadd.f32 %v135, %v238
    %v360 = vadd.f32 %v136, %v238
    %v361 = vadd.f32 %v137, %v238
    %v362 = vadd.f32 %v138, %v243
    %v363 = vadd.f32 %v139, %v243
    %v364 = vadd.f32 %v140, %v243
    %v365 = vadd.f32 %v141, %v243
    %v366 = vadd.f32 %v142, %v243
    %v367 = vadd.f32 %v143, %v243
    %v368 = vadd.f32 %v144, %v243
    %v369 = vadd.f32 %v145, %v243
    %v370 = vadd.f32 %v146, %v248
    %v371 = vadd.f32 %v147, %v248
    %v372 = vadd.f32 %v148, %v248
    %v373 = vadd.f32 %v149, %v248
    %v374 = vadd.f32 %v150, %v248
    %v375 = vadd.f32 %v151, %v248
    %v376 = vadd.f32 %v152, %v248
    %v377 = vadd.f32 %v153, %v248
    %378 = vst [vmem:[#allocation5] sm:$0xff] %v250
    %379 = vst [vmem:[#allocation5 + $0x8] sm:$0xff] %v251
    %380 = vst [vmem:[#allocation5 + $0x10] sm:$0xff] %v252
    %381 = vst [vmem:[#allocation5 + $0x18] sm:$0xff] %v253
    %382 = vst [vmem:[#allocation5 + $0x20] sm:$0xff] %v254
    %383 = vst [vmem:[#allocation5 + $0x28] sm:$0xff] %v255
    %384 = vst [vmem:[#allocation5 + $0x30] sm:$0xff] %v256
    %385 = vst [vmem:[#allocation5 + $0x38] sm:$0xff] %v257
    %386 = vst [vmem:[#allocation5 + $0x40] sm:$0xff] %v258
    %387 = vst [vmem:[#allocation5 + $0x48] sm:$0xff] %v259
    %388 = vst [vmem:[#allocation5 + $0x50] sm:$0xff] %v260
    %389 = vst [vmem:[#allocation5 + $0x58] sm:$0xff] %v261
    %390 = vst [vmem:[#allocation5 + $0x60] sm:$0xff] %v262
    %391 = vst [vmem:[#allocation5 + $0x68] sm:$0xff] %v263
    %392 = vst [vmem:[#allocation5 + $0x70] sm:$0xff] %v264
    %393 = vst [vmem:[#allocation5 + $0x78] sm:$0xff] %v265
    %394 = vst [vmem:[#allocation5 + $0x80] sm:$0xff] %v266
    %395 = vst [vmem:[#allocation5 + $0x88] sm:$0xff] %v267
    %396 = vst [vmem:[#allocation5 + $0x90] sm:$0xff] %v268
    %397 = vst [vmem:[#allocation5 + $0x98] sm:$0xff] %v269
    %398 = vst [vmem:[#allocation5 + $0xa0] sm:$0xff] %v270
    %399 = vst [vmem:[#allocation5 + $0xa8] sm:$0xff] %v271
    %400 = vst [vmem:[#allocation5 + $0xb0] sm:$0xff] %v272
    %401 = vst [vmem:[#allocation5 + $0xb8] sm:$0xff] %v273
    %402 = vst [vmem:[#allocation5 + $0xc0] sm:$0xff] %v274
    %403 = vst [vmem:[#allocation5 + $0xc8] sm:$0xff] %v275
    %404 = vst [vmem:[#allocation5 + $0xd0] sm:$0xff] %v276
    %405 = vst [vmem:[#allocation5 + $0xd8] sm:$0xff] %v277
    %406 = vst [vmem:[#allocation5 + $0xe0] sm:$0xff] %v278
    %407 = vst [vmem:[#allocation5 + $0xe8] sm:$0xff] %v279
    %408 = vst [vmem:[#allocation5 + $0xf0] sm:$0xff] %v280
    %409 = vst [vmem:[#allocation5 + $0xf8] sm:$0xff] %v281
    %410 = vst [vmem:[#allocation5 + $0x100] sm:$0xff] %v282
    %411 = vst [vmem:[#allocation5 + $0x108] sm:$0xff] %v283
    %412 = vst [vmem:[#allocation5 + $0x110] sm:$0xff] %v284
    %413 = vst [vmem:[#allocation5 + $0x118] sm:$0xff] %v285
    %414 = vst [vmem:[#allocation5 + $0x120] sm:$0xff] %v286
    %415 = vst [vmem:[#allocation5 + $0x128] sm:$0xff] %v287
    %416 = vst [vmem:[#allocation5 + $0x130] sm:$0xff] %v288
    %417 = vst [vmem:[#allocation5 + $0x138] sm:$0xff] %v289
    %418 = vst [vmem:[#allocation5 + $0x140] sm:$0xff] %v290
    %419 = vst [vmem:[#allocation5 + $0x148] sm:$0xff] %v291
    %420 = vst [vmem:[#allocation5 + $0x150] sm:$0xff] %v292
    %421 = vst [vmem:[#allocation5 + $0x158] sm:$0xff] %v293
    %422 = vst [vmem:[#allocation5 + $0x160] sm:$0xff] %v294
    %423 = vst [vmem:[#allocation5 + $0x168] sm:$0xff] %v295
    %424 = vst [vmem:[#allocation5 + $0x170] sm:$0xff] %v296
    %425 = vst [vmem:[#allocation5 + $0x178] sm:$0xff] %v297
    %426 = vst [vmem:[#allocation5 + $0x180] sm:$0xff] %v298
    %427 = vst [vmem:[#allocation5 + $0x188] sm:$0xff] %v299
    %428 = vst [vmem:[#allocation5 + $0x190] sm:$0xff] %v300
    %429 = vst [vmem:[#allocation5 + $0x198] sm:$0xff] %v301
    %430 = vst [vmem:[#allocation5 + $0x1a0] sm:$0xff] %v302
    %431 = vst [vmem:[#allocation5 + $0x1a8] sm:$0xff] %v303
    %432 = vst [vmem:[#allocation5 + $0x1b0] sm:$0xff] %v304
    %433 = vst [vmem:[#allocation5 + $0x1b8] sm:$0xff] %v305
    %434 = vst [vmem:[#allocation5 + $0x1c0] sm:$0xff] %v306
    %435 = vst [vmem:[#allocation5 + $0x1c8] sm:$0xff] %v307
    %436 = vst [vmem:[#allocation5 + $0x1d0] sm:$0xff] %v308
    %437 = vst [vmem:[#allocation5 + $0x1d8] sm:$0xff] %v309
    %438 = vst [vmem:[#allocation5 + $0x1e0] sm:$0xff] %v310
    %439 = vst [vmem:[#allocation5 + $0x1e8] sm:$0xff] %v311
    %440 = vst [vmem:[#allocation5 + $0x1f0] sm:$0xff] %v312
    %441 = vst [vmem:[#allocation5 + $0x1f8] sm:$0xff] %v313
    %442 = vst [vmem:[#allocation5 + $0x200] sm:$0xff] %v314
    %443 = vst [vmem:[#allocation5 + $0x208] sm:$0xff] %v315
    %444 = vst [vmem:[#allocation5 + $0x210] sm:$0xff] %v316
    %445 = vst [vmem:[#allocation5 + $0x218] sm:$0xff] %v317
    %446 = vst [vmem:[#allocation5 + $0x220] sm:$0xff] %v318
    %447 = vst [vmem:[#allocation5 + $0x228] sm:$0xff] %v319
    %448 = vst [vmem:[#allocation5 + $0x230] sm:$0xff] %v320
    %449 = vst [vmem:[#allocation5 + $0x238] sm:$0xff] %v321
    %450 = vst [vmem:[#allocation5 + $0x240] sm:$0xff] %v322
    %451 = vst [vmem:[#allocation5 + $0x248] sm:$0xff] %v323
    %452 = vst [vmem:[#allocation5 + $0x250] sm:$0xff] %v324
    %453 = vst [vmem:[#allocation5 + $0x258] sm:$0xff] %v325
    %454 = vst [vmem:[#allocation5 + $0x260] sm:$0xff] %v326
    %455 = vst [vmem:[#allocation5 + $0x268] sm:$0xff] %v327
    %456 = vst [vmem:[#allocation5 + $0x270] sm:$0xff] %v328
    %457 = vst [vmem:[#allocation5 + $0x278] sm:$0xff] %v329
    %458 = vst [vmem:[#allocation5 + $0x280] sm:$0xff] %v330
    %459 = vst [vmem:[#allocation5 + $0x288] sm:$0xff] %v331
    %460 = vst [vmem:[#allocation5 + $0x290] sm:$0xff] %v332
    %461 = vst [vmem:[#allocation5 + $0x298] sm:$0xff] %v333
    %462 = vst [vmem:[#allocation5 + $0x2a0] sm:$0xff] %v334
    %463 = vst [vmem:[#allocation5 + $0x2a8] sm:$0xff] %v335
    %464 = vst [vmem:[#allocation5 + $0x2b0] sm:$0xff] %v336
    %465 = vst [vmem:[#allocation5 + $0x2b8] sm:$0xff] %v337
    %466 = vst [vmem:[#allocation5 + $0x2c0] sm:$0xff] %v338
    %467 = vst [vmem:[#allocation5 + $0x2c8] sm:$0xff] %v339
    %468 = vst [vmem:[#allocation5 + $0x2d0] sm:$0xff] %v340
    %469 = vst [vmem:[#allocation5 + $0x2d8] sm:$0xff] %v341
    %470 = vst [vmem:[#allocation5 + $0x2e0] sm:$0xff] %v342
    %471 = vst [vmem:[#allocation5 + $0x2e8] sm:$0xff] %v343
    %472 = vst [vmem:[#allocation5 + $0x2f0] sm:$0xff] %v344
    %473 = vst [vmem:[#allocation5 + $0x2f8] sm:$0xff] %v345
    %474 = vst [vmem:[#allocation5 + $0x300] sm:$0xff] %v346
    %475 = vst [vmem:[#allocation5 + $0x308] sm:$0xff] %v347
    %476 = vst [vmem:[#allocation5 + $0x310] sm:$0xff] %v348
    %477 = vst [vmem:[#allocation5 + $0x318] sm:$0xff] %v349
    %478 = vst [vmem:[#allocation5 + $0x320] sm:$0xff] %v350
    %479 = vst [vmem:[#allocation5 + $0x328] sm:$0xff] %v351
    %480 = vst [vmem:[#allocation5 + $0x330] sm:$0xff] %v352
    %481 = vst [vmem:[#allocation5 + $0x338] sm:$0xff] %v353
    %482 = vst [vmem:[#allocation5 + $0x340] sm:$0xff] %v354
    %483 = vst [vmem:[#allocation5 + $0x348] sm:$0xff] %v355
    %484 = vst [vmem:[#allocation5 + $0x350] sm:$0xff] %v356
    %485 = vst [vmem:[#allocation5 + $0x358] sm:$0xff] %v357
    %486 = vst [vmem:[#allocation5 + $0x360] sm:$0xff] %v358
    %487 = vst [vmem:[#allocation5 + $0x368] sm:$0xff] %v359
    %488 = vst [vmem:[#allocation5 + $0x370] sm:$0xff] %v360
    %489 = vst [vmem:[#allocation5 + $0x378] sm:$0xff] %v361
    %490 = vst [vmem:[#allocation5 + $0x380] sm:$0xff] %v362
    %491 = vst [vmem:[#allocation5 + $0x388] sm:$0xff] %v363
    %492 = vst [vmem:[#allocation5 + $0x390] sm:$0xff] %v364
    %493 = vst [vmem:[#allocation5 + $0x398] sm:$0xff] %v365
    %494 = vst [vmem:[#allocation5 + $0x3a0] sm:$0xff] %v366
    %495 = vst [vmem:[#allocation5 + $0x3a8] sm:$0xff] %v367
    %496 = vst [vmem:[#allocation5 + $0x3b0] sm:$0xff] %v368
    %497 = vst [vmem:[#allocation5 + $0x3b8] sm:$0xff] %v369
    %498 = vst [vmem:[#allocation5 + $0x3c0] sm:$0xff] %v370
    %499 = vst [vmem:[#allocation5 + $0x3c8] sm:$0xff] %v371
    %500 = vst [vmem:[#allocation5 + $0x3d0] sm:$0xff] %v372
    %501 = vst [vmem:[#allocation5 + $0x3d8] sm:$0xff] %v373
    %502 = vst [vmem:[#allocation5 + $0x3e0] sm:$0xff] %v374
    %503 = vst [vmem:[#allocation5 + $0x3e8] sm:$0xff] %v375
    %504 = vst [vmem:[#allocation5 + $0x3f0] sm:$0xff] %v376
    %505 = vst [vmem:[#allocation5 + $0x3f8] sm:$0xff] %v377
    // Predicated region
    $region14: #{tpu_custom_call.1} parent=1 // pred_check
      _
    $region15: #{tpu_custom_call.1} parent=1 // pred_check_branch
      %507 = sbr.rel (0) target = $region17
    $region16: #{tpu_custom_call.1} parent=1 // pred_region
      %s509 = ssub.s32 16384, 16384
      %510 = vsyncadd [#allocation4], %s509
      %s511 = sshll.u32 [#allocation5], 4
      %s512 = int_to_ptr.vmem [resolvable:$true] %s511
      %517 = dma.vmem_to_hbm [thread:$0]  %s512, 16384, %s2, [#allocation4], 1024, 1024, 64
    $region17: #{tpu_custom_call.1} parent=1 // pred_fallthru
      _
    // Predicated region
    $region18: #{tpu_custom_call.1} parent=1 // pred_check
      _
    $region19: #{tpu_custom_call.1} parent=1 // pred_check_branch
      %519 = sbr.rel (0) target = $region21
    $region20: #{tpu_custom_call.1} parent=1 // pred_region
      %520 = dma.done [#allocation4], 16384
    $region21: #{tpu_custom_call.1} parent=1 // pred_fallthru
      _
    %521 = vsyncpa [#allocation3], 1
    %522 = vsyncpa [#allocation4], 1

</llo_original>
